<compile_context>
chip_gen: v7x
topology: tpu7x:2x2x1
jax: 0.10.0
libtpu: 0.0.40
codegen_flags: <defaults>
</compile_context>

<pallas_src>
import functools

import jax
import jax.numpy as jnp
from jax import lax
from jax.experimental import pallas as pl
from jax.experimental.pallas import tpu as pltpu


# ---------------------------------------------------------------------------
# Kernels
# ---------------------------------------------------------------------------

def _bigram_logits_kernel(idx_ref, emb_ref, logits_ref):
    """Embedding lookup as a one-hot @ table MXU matmul (lane-dense vocab)."""
    idx = idx_ref[...]                                    # (TILE_N, 1) int32
    tn = idx.shape[0]
    vp = emb_ref.shape[1]

    col = lax.broadcasted_iota(jnp.int32, (tn, vp), 1)
    onehot = (col == idx).astype(emb_ref.dtype)           # cast only at dot input
    logits_ref[...] = jnp.dot(onehot, emb_ref[...],
                              preferred_element_type=jnp.float32)


def _bigram_loss_kernel(idx_ref, tgt_ref, emb_ref, logits_ref, loss_ref,
                        loss_acc, *, n_valid, v_valid, tile_n):
    """Embedding lookup + mean softmax cross-entropy, tiled over N = B*T."""
    i = pl.program_id(0)

    @pl.when(i == 0)
    def _init():
        loss_acc[0] = jnp.float32(0.0)

    idx = idx_ref[...]                                    # (TILE_N, 1) int32
    tgt = tgt_ref[...]                                    # (TILE_N, 1) int32
    tn = idx.shape[0]
    vp = emb_ref.shape[1]

    col = lax.broadcasted_iota(jnp.int32, (tn, vp), 1)

    # Embedding gather as one-hot @ table on the MXU (f32 accumulation).
    onehot = (col == idx).astype(emb_ref.dtype)
    logits = jnp.dot(onehot, emb_ref[...], preferred_element_type=jnp.float32)
    logits_ref[...] = logits                              # lane-dense (TILE_N, Vp)

    # Cross-entropy over the valid vocab columns only (padded cols -> -inf).
    neg = jnp.float32(-1e30)
    masked = jnp.where(col < v_valid, logits, neg)
    m = jnp.max(masked, axis=-1, keepdims=True)
    lse = jnp.log(jnp.sum(jnp.exp(masked - m), axis=-1, keepdims=True)) + m
    # Target logit via a single select on the existing iota (no second one-hot).
    tgt_logit = jnp.sum(jnp.where(col == tgt, logits, 0.0),
                        axis=-1, keepdims=True)

    # Mask rows that only exist because N was padded up to a tile multiple.
    row = i * tile_n + lax.broadcasted_iota(jnp.int32, (tn, 1), 0)
    valid_row = (row < n_valid).astype(jnp.float32)
    loss_acc[0] += jnp.sum((lse - tgt_logit) * valid_row)

    @pl.when(i == pl.num_programs(0) - 1)
    def _finalize():
        loss_ref[0, 0] = loss_acc[0] / jnp.float32(n_valid)


# ---------------------------------------------------------------------------
# Wrapper (PyTorch BigramLanguageModel.forward semantics)
# ---------------------------------------------------------------------------

def bigram_forward(idx, embedding_table, targets=None, *,
                   table_dtype=jnp.float32, tile_n=256):
    """Pallas-backed equivalent of BigramLanguageModel.forward.

    Returns (logits (B, T, V), None) if targets is None, else
    (logits (B*T, V), scalar mean cross-entropy loss), matching PyTorch.
    """
    B, T = idx.shape
    V = embedding_table.shape[0]
    N = B * T

    # Lane-dense vocab (multiple of 128) and sublane-aligned row tiling.
    Vp = pl.cdiv(V, 128) * 128
    tile_n = max(8, min(tile_n, pl.cdiv(N, 8) * 8))
    Np = pl.cdiv(N, tile_n) * tile_n
    grid_n = Np // tile_n

    # Zero-padded table; padded rows are never selected (idx < V), padded
    # columns produce 0 logits and are masked out of the LSE in-kernel.
    emb = jnp.zeros((Vp, Vp), table_dtype).at[:V, :V].set(
        embedding_table.astype(table_dtype))

    idx_flat = jnp.zeros((Np, 1), jnp.int32).at[:N, 0].set(
        idx.reshape(N).astype(jnp.int32))

    itemsize = jnp.dtype(table_dtype).itemsize
    vmem_limit = int(min(
        2 * Vp * Vp * itemsize              # resident table (double-buffer slack)
        + 4 * tile_n * Vp * 4               # double-buffered logits tiles (f32)
        + (4 << 20),                        # idx/tgt tiles + headroom
        100 << 20))

    emb_spec = pl.BlockSpec((Vp, Vp), lambda i: (0, 0))        # table resident
    rows_spec = pl.BlockSpec((tile_n, 1), lambda i: (i, 0))
    logits_spec = pl.BlockSpec((tile_n, Vp), lambda i: (i, 0))  # lane-dense out

    if targets is None:
        logits_pad = pl.pallas_call(
            _bigram_logits_kernel,
            out_shape=jax.ShapeDtypeStruct((Np, Vp), jnp.float32),
            grid_spec=pltpu.PrefetchScalarGridSpec(
                num_scalar_prefetch=0,
                grid=(grid_n,),
                in_specs=[rows_spec, emb_spec],
                out_specs=logits_spec),
            compiler_params=pltpu.CompilerParams(
                dimension_semantics=("parallel",),   # megacore on v7x
                vmem_limit_bytes=vmem_limit),
        )(idx_flat, emb)
        return logits_pad[:N, :V].reshape(B, T, V), None

    tgt_flat = jnp.zeros((Np, 1), jnp.int32).at[:N, 0].set(
        targets.reshape(N).astype(jnp.int32))

    kernel = functools.partial(_bigram_loss_kernel,
                               n_valid=N, v_valid=V, tile_n=tile_n)
    logits_pad, loss = pl.pallas_call(
        kernel,
        out_shape=(jax.ShapeDtypeStruct((Np, Vp), jnp.float32),
                   jax.ShapeDtypeStruct((1, 1), jnp.float32)),
        grid_spec=pltpu.PrefetchScalarGridSpec(
            num_scalar_prefetch=0,
            grid=(grid_n,),
            in_specs=[rows_spec, rows_spec, emb_spec],
            out_specs=(logits_spec,
                       pl.BlockSpec((1, 1), lambda i: (0, 0),
                                    memory_space=pltpu.SMEM)),
            scratch_shapes=[pltpu.SMEM((1,), jnp.float32)]),
        compiler_params=pltpu.CompilerParams(
            dimension_semantics=("arbitrary",),      # loss accumulates over tiles
            vmem_limit_bytes=vmem_limit),
    )(idx_flat, tgt_flat, emb)

    return logits_pad[:N, :V], loss[0, 0]


# ---------------------------------------------------------------------------
# Plain-JAX reference for correctness checking
# ---------------------------------------------------------------------------

def _reference_forward(idx, embedding_table, targets=None):
    logits = jnp.take(embedding_table, idx, axis=0)            # (B, T, V)
    if targets is None:
        return logits, None
    B, T, C = logits.shape
    lf = logits.reshape(B * T, C)
    tf = targets.reshape(B * T)
    lse = jax.nn.logsumexp(lf, axis=-1)
    tgt_logit = jnp.take_along_axis(lf, tf[:, None], axis=-1)[:, 0]
    return lf, jnp.mean(lse - tgt_logit)


if __name__ == "__main__":
    key = jax.random.PRNGKey(0)
    k_emb, k_idx, k_tgt, k_idx2, k_tgt2 = jax.random.split(key, 5)

    vocab_size = 65     # tinyshakespeare char vocab size
    B, T = 2, 8

    # nn.Embedding default init: N(0, 1)
    embedding_table = jax.random.normal(k_emb, (vocab_size, vocab_size),
                                        dtype=jnp.float32)
    idx = jax.random.randint(k_idx, (B, T), 0, vocab_size, dtype=jnp.int32)
    targets = jax.random.randint(k_tgt, (B, T), 0, vocab_size, dtype=jnp.int32)

    # 1) f32 table, with targets (flattened logits + scalar loss), as in PyTorch.
    logits, loss = bigram_forward(idx, embedding_table, targets)
    jax.block_until_ready((logits, loss))
    ref_logits, ref_loss = _reference_forward(idx, embedding_table, targets)
    assert logits.shape == (B * T, vocab_size)
    assert jnp.allclose(logits, ref_logits, atol=1e-5, rtol=1e-5)
    assert jnp.allclose(loss, ref_loss, atol=1e-5, rtol=1e-5)

    # 2) Inference path (no targets): logits-only kernel, loss path skipped.
    logits_nt, loss_nt = bigram_forward(idx, embedding_table, None)
    jax.block_until_ready(logits_nt)
    assert loss_nt is None
    assert logits_nt.shape == (B, T, vocab_size)
    ref_logits_nt, _ = _reference_forward(idx, embedding_table, None)
    assert jnp.allclose(logits_nt, ref_logits_nt, atol=1e-5, rtol=1e-5)

    # 3) bf16 table on the MXU (v6e/v7x fast path); compare vs a bf16-aware ref.
    emb_bf16_as_f32 = embedding_table.astype(jnp.bfloat16).astype(jnp.float32)
    logits_bf, loss_bf = bigram_forward(idx, embedding_table, targets,
                                        table_dtype=jnp.bfloat16)
    jax.block_until_ready((logits_bf, loss_bf))
    ref_logits_bf, ref_loss_bf = _reference_forward(idx, emb_bf16_as_f32, targets)
    assert jnp.allclose(logits_bf, ref_logits_bf, atol=1e-4, rtol=1e-4)
    assert jnp.allclose(loss_bf, ref_loss_bf, atol=1e-4, rtol=1e-4)

    # 4) Multi-tile grid (N > TILE_N, last tile padded) exercises the loss
    #    accumulator + row masking.
    B2, T2 = 4, 160     # N = 640 -> 3 tiles of 256 (128 padded rows in last tile)
    idx2 = jax.random.randint(k_idx2, (B2, T2), 0, vocab_size, dtype=jnp.int32)
    tgt2 = jax.random.randint(k_tgt2, (B2, T2), 0, vocab_size, dtype=jnp.int32)
    logits2, loss2 = bigram_forward(idx2, embedding_table, tgt2, tile_n=256)
    jax.block_until_ready((logits2, loss2))
    ref_logits2, ref_loss2 = _reference_forward(idx2, embedding_table, tgt2)
    assert logits2.shape == (B2 * T2, vocab_size)
    assert jnp.allclose(logits2, ref_logits2, atol=1e-5, rtol=1e-5)
    assert jnp.allclose(loss2, ref_loss2, atol=1e-5, rtol=1e-5)

    print("KERNEL_OK")
</pallas_src>

<mosaic_0001>
module attributes {stable_mosaic.version = 11 : i64} {
  func.func @_bigram_loss_kernel(%arg0: i32, %arg1: memref<16x1xi32, #tpu.memory_space<vmem>>, %arg2: memref<16x1xi32, #tpu.memory_space<vmem>>, %arg3: memref<128x128xf32, #tpu.memory_space<vmem>>, %arg4: memref<16x128xf32, #tpu.memory_space<vmem>>, %arg5: memref<1x1xf32, #tpu.memory_space<smem>>, %arg6: memref<1xf32, #tpu.memory_space<smem>>) attributes {dimension_semantics = [#tpu.dimension_semantics<arbitrary>], iteration_bounds = array<i64: 1>, scalar_prefetch = 0 : i64, scratch_operands = 1 : i64, tpu.core_type = #tpu.core_type<tc>, window_params = [{transform_indices = @transform_0, window_bounds = array<i64: 16, 1>}, {transform_indices = @transform_1, window_bounds = array<i64: 16, 1>}, {pipeline_mode = #tpu.pipeline_mode<synchronous>, transform_indices = @transform_2, window_bounds = array<i64: 128, 128>}, {transform_indices = @transform_3, window_bounds = array<i64: 16, 128>}, {transform_indices = @transform_4, window_bounds = array<i64: 1, 1>}]} {
    %c0_i32 = arith.constant 0 : i32
    %0 = arith.cmpi eq, %arg0, %c0_i32 : i32
    %1 = arith.extui %0 : i1 to i32
    %c0_i32_0 = arith.constant 0 : i32
    %2 = arith.cmpi ne, %1, %c0_i32_0 : i32
    scf.if %2 {
      %cst_19 = arith.constant 0.000000e+00 : f32
      %c0_20 = arith.constant 0 : index
      %52 = memref.load %arg6[%c0_20] : memref<1xf32, #tpu.memory_space<smem>>
      memref.store %cst_19, %arg6[%c0_20] : memref<1xf32, #tpu.memory_space<smem>>
    } else {
    }
    %c0 = arith.constant 0 : index
    %c0_1 = arith.constant 0 : index
    %3 = vector.load %arg1[%c0, %c0_1] : memref<16x1xi32, #tpu.memory_space<vmem>>, vector<16x1xi32>
    %c0_2 = arith.constant 0 : index
    %c0_3 = arith.constant 0 : index
    %4 = vector.load %arg2[%c0_2, %c0_3] : memref<16x1xi32, #tpu.memory_space<vmem>>, vector<16x1xi32>
    %5 = tpu.iota {dimensions = array<i32: 1>} : vector<16x128xi32>
    %6 = vector.broadcast %3 : vector<16x1xi32> to vector<16x128xi32>
    %7 = arith.cmpi eq, %5, %6 : vector<16x128xi32>
    %8 = arith.extui %7 : vector<16x128xi1> to vector<16x128xi32>
    %9 = arith.sitofp %8 : vector<16x128xi32> to vector<16x128xf32>
    %c0_4 = arith.constant 0 : index
    %c0_5 = arith.constant 0 : index
    %10 = vector.load %arg3[%c0_4, %c0_5] : memref<128x128xf32, #tpu.memory_space<vmem>>, vector<128x128xf32>
    %cst = arith.constant dense<0.000000e+00> : vector<16x128xf32>
    %11 = tpu.matmul %9, %10, %cst {dimension_numbers = #tpu.dot_dimension_numbers<[1], [0], [0], [1], [0, 0, 1, 1], [], []>} : vector<16x128xf32>, vector<128x128xf32>, vector<16x128xf32> -> vector<16x128xf32>
    %c0_6 = arith.constant 0 : index
    %c0_7 = arith.constant 0 : index
    %12 = vector.load %arg4[%c0_6, %c0_7] : memref<16x128xf32, #tpu.memory_space<vmem>>, vector<16x128xf32>
    tpu.vector_store %arg4[%c0_6, %c0_7], %11 {strides = array<i32>} : memref<16x128xf32, #tpu.memory_space<vmem>>, vector<16x128xf32>,
    %c65_i32 = arith.constant 65 : i32
    %13 = vector.broadcast %c65_i32 : i32 to vector<16x128xi32>
    %14 = arith.cmpi slt, %5, %13 : vector<16x128xi32>
    %cst_8 = arith.constant -1.000000e+30 : f32
    %15 = vector.broadcast %cst_8 : f32 to vector<16x128xf32>
    %16 = arith.select %14, %11, %15 : vector<16x128xi1>, vector<16x128xf32>
    %cst_9 = arith.constant dense<0xFF800000> : vector<16xf32>
    %17 = vector.multi_reduction <maximumf>, %16, %cst_9 [1] : vector<16x128xf32> to vector<16xf32>
    %18 = vector.shape_cast %17 : vector<16xf32> to vector<16x1xf32>
    %19 = vector.broadcast %18 : vector<16x1xf32> to vector<16x128xf32>
    %20 = arith.subf %16, %19 : vector<16x128xf32>
    %21 = math.exp %20 : vector<16x128xf32>
    %cst_10 = arith.constant dense<0.000000e+00> : vector<16xf32>
    %22 = vector.multi_reduction <add>, %21, %cst_10 [1] : vector<16x128xf32> to vector<16xf32>
    %23 = vector.shape_cast %22 : vector<16xf32> to vector<16x1xf32>
    %24 = math.log %23 : vector<16x1xf32>
    %25 = arith.addf %24, %18 : vector<16x1xf32>
    %26 = vector.broadcast %4 : vector<16x1xi32> to vector<16x128xi32>
    %27 = arith.cmpi eq, %5, %26 : vector<16x128xi32>
    %cst_11 = arith.constant 0.000000e+00 : f32
    %28 = vector.broadcast %cst_11 : f32 to vector<16x128xf32>
    %29 = arith.select %27, %11, %28 : vector<16x128xi1>, vector<16x128xf32>
    %cst_12 = arith.constant dense<0.000000e+00> : vector<16xf32>
    %30 = vector.multi_reduction <add>, %29, %cst_12 [1] : vector<16x128xf32> to vector<16xf32>
    %31 = vector.shape_cast %30 : vector<16xf32> to vector<16x1xf32>
    %c16_i32 = arith.constant 16 : i32
    %32 = arith.muli %arg0, %c16_i32 : i32
    %33 = tpu.iota {dimensions = array<i32: 0>} : vector<16x1xi32>
    %34 = vector.broadcast %32 : i32 to vector<16x1xi32>
    %35 = arith.addi %34, %33 : vector<16x1xi32>
    %c16_i32_13 = arith.constant 16 : i32
    %36 = vector.broadcast %c16_i32_13 : i32 to vector<16x1xi32>
    %37 = arith.cmpi slt, %35, %36 : vector<16x1xi32>
    %38 = arith.extui %37 : vector<16x1xi1> to vector<16x1xi32>
    %39 = arith.sitofp %38 : vector<16x1xi32> to vector<16x1xf32>
    %c0_14 = arith.constant 0 : index
    %40 = memref.load %arg6[%c0_14] : memref<1xf32, #tpu.memory_space<smem>>
    %41 = arith.subf %25, %31 : vector<16x1xf32>
    %42 = arith.mulf %41, %39 : vector<16x1xf32>
    %43 = vector.shape_cast %42 : vector<16x1xf32> to vector<1x16x1xf32>
    %cst_15 = arith.constant dense<0.000000e+00> : vector<1xf32>
    %44 = vector.multi_reduction <add>, %43, %cst_15 [1, 2] : vector<1x16x1xf32> to vector<1xf32>
    %45 = vector.shape_cast %44 : vector<1xf32> to vector<1x1x1xf32>
    %46 = vector.extract %45[0, 0, 0] : f32 from vector<1x1x1xf32>
    %47 = arith.addf %40, %46 : f32
    %c0_16 = arith.constant 0 : index
    %48 = memref.load %arg6[%c0_16] : memref<1xf32, #tpu.memory_space<smem>>
    memref.store %47, %arg6[%c0_16] : memref<1xf32, #tpu.memory_space<smem>>
    %c0_i32_17 = arith.constant 0 : i32
    %49 = arith.cmpi eq, %arg0, %c0_i32_17 : i32
    %50 = arith.extui %49 : i1 to i32
    %c0_i32_18 = arith.constant 0 : i32
    %51 = arith.cmpi ne, %50, %c0_i32_18 : i32
    scf.if %51 {
      %c0_19 = arith.constant 0 : index
      %52 = memref.load %arg6[%c0_19] : memref<1xf32, #tpu.memory_space<smem>>
      %cst_20 = arith.constant 1.600000e+01 : f32
      %53 = arith.divf %52, %cst_20 : f32
      %c0_21 = arith.constant 0 : index
      %c0_22 = arith.constant 0 : index
      %54 = memref.load %arg5[%c0_21, %c0_22] : memref<1x1xf32, #tpu.memory_space<smem>>
      memref.store %53, %arg5[%c0_21, %c0_22] : memref<1x1xf32, #tpu.memory_space<smem>>
    } else {
    }
    return
  }
  func.func @transform_0(%arg0: i32) -> (i32, i32) {
    %c0_i32 = arith.constant 0 : i32
    %c0_i32_0 = arith.constant 0 : i32
    return %arg0, %c0_i32 : i32, i32
  }
  func.func @transform_1(%arg0: i32) -> (i32, i32) {
    %c0_i32 = arith.constant 0 : i32
    %c0_i32_0 = arith.constant 0 : i32
    return %arg0, %c0_i32 : i32, i32
  }
  func.func @transform_2(%arg0: i32) -> (i32, i32) {
    %c0_i32 = arith.constant 0 : i32
    %c0_i32_0 = arith.constant 0 : i32
    %c0_i32_1 = arith.constant 0 : i32
    return %c0_i32, %c0_i32_0 : i32, i32
  }
  func.func @transform_3(%arg0: i32) -> (i32, i32) {
    %c0_i32 = arith.constant 0 : i32
    %c0_i32_0 = arith.constant 0 : i32
    return %arg0, %c0_i32 : i32, i32
  }
  func.func @transform_4(%arg0: i32) -> (i32, i32) {
    %c0_i32 = arith.constant 0 : i32
    %c0_i32_0 = arith.constant 0 : i32
    %c0_i32_1 = arith.constant 0 : i32
    return %c0_i32, %c0_i32_0 : i32, i32
  }
}

</mosaic_0001>

<llo_original>
// kernel: tpu_custom_call.1
$region0: #{tpu_custom_call.1}
  #allocation0 [shape = 'u32[]', space=smem, size = 0x4, offset = 0x4, fixed_abs, tag = 'smem constant byte address 0x4 - core index']
  #allocation1 [shape = 'u32[144,128]{1,0:T(1,128)}', space=vmem, size = 0x12000, scoped, tag = 'internal scratch']
  #allocation2 [shape = 'f32[1]{0:T(128)}', space=smem, size = 0x200, scoped, tag = 'scratch operand']
  %s0 = inlined_call_operand.vmem [shape: s32[16,1], index: 0, kind: input, shape index: {}]
  %s1 = inlined_call_operand.vmem [shape: s32[16,1], index: 1, kind: input, shape index: {}]
  %s2 = inlined_call_operand.hbm [shape: f32[128,128], index: 2, kind: input, shape index: {}]
  %s3 = inlined_call_operand.hbm [shape: f32[16,128], index: 3, kind: output, shape index: {0}]
  %s4 = inlined_call_operand.hbm [shape: f32[1,1], index: 4, kind: output, shape index: {1}]
  %5 = xla_tuple %s3, %s4
  %s6 = sld [smem:[#allocation0]]
  $region42: #{tpu_custom_call.1} parent=0
    _
  %s8 = ssub.s32 1, %s6
  %s9 = scalar_select 0, %s8, %s6
  $region1: #{tpu_custom_call.1} parent=0
    #allocation3 [shape = 'u8[65536]{0}', space=vmem, size = 0x10000, scoped, tag = 'input window, operand 2, single buffered']
    #allocation4 [shape = 's32[1]{0}', space=sflag, size = 0x4, scoped, tag = 'scoped memory for tpu_custom_call.1']
    #allocation5 [shape = 's32[1]{0}', space=sflag, size = 0x4, scoped, tag = 'scoped memory for tpu_custom_call.1']
    #allocation6 [shape = 's32[1]{0}', space=sflag, size = 0x4, scoped, tag = 'scoped memory for tpu_custom_call.1']
    #allocation7 [shape = 'u8[8192]{0}', space=vmem, size = 0x2000, scoped, tag = 'output window, operand 0, single buffered']
    #allocation8 [shape = 'u8[512]{0}', space=smem, size = 0x200, scoped, tag = 'output window, operand 1, single buffered']
    %10 = vsyncpa [#allocation4], 0
    %11 = vsyncpa [#allocation5], 0
    %12 = vsyncpa [#allocation6], 0
    // Predicated region
    $region2: #{tpu_custom_call.1} parent=1 // pred_check
      _
    $region3: #{tpu_custom_call.1} parent=1 // pred_check_branch
      %14 = sbr.rel (0) target = $region5
    $region4: #{tpu_custom_call.1} parent=1 // pred_region
      _
    $region5: #{tpu_custom_call.1} parent=1 // pred_fallthru
      _
    // Predicated region
    $region6: #{tpu_custom_call.1} parent=1 // pred_check
      _
    $region7: #{tpu_custom_call.1} parent=1 // pred_check_branch
      %16 = sbr.rel (0) target = $region9
    $region8: #{tpu_custom_call.1} parent=1 // pred_region
      _
    $region9: #{tpu_custom_call.1} parent=1 // pred_fallthru
      _
    // Predicated region
    $region10: #{tpu_custom_call.1} parent=1 // pred_check
      _
    $region11: #{tpu_custom_call.1} parent=1 // pred_check_branch
      %18 = sbr.rel (0) target = $region13
    $region12: #{tpu_custom_call.1} parent=1 // pred_region
      %s20 = ssub.s32 2048, 2048
      %21 = vsyncadd [#allocation4], %s20
      %s22 = sshll.u32 [#allocation3], 4
      %s23 = int_to_ptr.vmem [resolvable:$true] %s22
      %28 = dma.hbm_to_vmem [thread:$0]  %s2, 2048, %s23, [#allocation4], 128, 128, 8
    $region13: #{tpu_custom_call.1} parent=1 // pred_fallthru
      _
    // Predicated region
    $region14: #{tpu_custom_call.1} parent=1 // pred_check
      _
    $region15: #{tpu_custom_call.1} parent=1 // pred_check_branch
      %30 = sbr.rel (0) target = $region17
    $region16: #{tpu_custom_call.1} parent=1 // pred_region
      %31 = dma.done [#allocation4], 2048
    $region17: #{tpu_custom_call.1} parent=1 // pred_fallthru
      _
    %p32 = scmp.eq.s32.totalorder 0, 0
    // Predicated region
    $region18: #{tpu_custom_call.1} parent=1 // pred_check
      %p33 = pneg %p32
    $region19: #{tpu_custom_call.1} parent=1 // pred_check_branch
      %35 = sbr.rel (%p33) target = $region21
    $region20: #{tpu_custom_call.1} parent=1 // pred_region
      %s36 = scalar_lea.smem [#allocation2], 0
      %37 = sst [smem:[%s36]] 0.0
    $region21: #{tpu_custom_call.1} parent=1 // pred_fallthru
      _
    %v38 = vld [vmem:[%s0] sm:$0xff]
    %v39 = vld [vmem:[%s0 + $0x8] sm:$0xff]
    %v40 = vld [vmem:[%s1] sm:$0xff]
    %v41 = vld [vmem:[%s1 + $0x8] sm:$0xff]
    %v42 = vlaneseq
    %v43 = vand.u32 %v42, 127
    %44 = vset.pattern.permute.xlu0 0
    %45 = vperm.xlu0 %44, %v38
    %v46 = vpop.permute.xlu0 %45
    %47 = vset.pattern.permute.xlu0 0
    %48 = vperm.xlu0 %47, %v39
    %v49 = vpop.permute.xlu0 %48
    %vm50 = vcmp.eq.s32.totalorder %v43, %v46
    %vm51 = vcmp.eq.s32.totalorder %v43, %v49
    %v52 = vsel %vm50, 1, 0
    %v53 = vsel %vm51, 1, 0
    %v54 = vcvt.s32.f32 %v52
    %v55 = vcvt.s32.f32 %v53
    %v56 = vld [vmem:[#allocation3] sm:$0xff]
    %v57 = vld [vmem:[#allocation3 + $0x8] sm:$0xff]
    %v58 = vld [vmem:[#allocation3 + $0x10] sm:$0xff]
    %v59 = vld [vmem:[#allocation3 + $0x18] sm:$0xff]
    %v60 = vld [vmem:[#allocation3 + $0x20] sm:$0xff]
    %v61 = vld [vmem:[#allocation3 + $0x28] sm:$0xff]
    %v62 = vld [vmem:[#allocation3 + $0x30] sm:$0xff]
    %v63 = vld [vmem:[#allocation3 + $0x38] sm:$0xff]
    %v64 = vld [vmem:[#allocation3 + $0x40] sm:$0xff]
    %v65 = vld [vmem:[#allocation3 + $0x48] sm:$0xff]
    %v66 = vld [vmem:[#allocation3 + $0x50] sm:$0xff]
    %v67 = vld [vmem:[#allocation3 + $0x58] sm:$0xff]
    %v68 = vld [vmem:[#allocation3 + $0x60] sm:$0xff]
    %v69 = vld [vmem:[#allocation3 + $0x68] sm:$0xff]
    %v70 = vld [vmem:[#allocation3 + $0x70] sm:$0xff]
    %v71 = vld [vmem:[#allocation3 + $0x78] sm:$0xff]
    %72 = vmatprep.subr.mxu0 0.0
    %73 = vmatpush1.msra.mxu0 %v56
    %74 = vmatprep.subr.mxu0 0.0
    %75 = vmatpush1.msra.mxu0 %v57
    %76 = vmatprep.subr.mxu0 0.0
    %77 = vmatpush1.msra.mxu0 %v58
    %78 = vmatprep.subr.mxu0 0.0
    %79 = vmatpush1.msra.mxu0 %v59
    %80 = vmatprep.subr.mxu0 0.0
    %81 = vmatpush1.msra.mxu0 %v60
    %82 = vmatprep.subr.mxu0 0.0
    %83 = vmatpush1.msra.mxu0 %v61
    %84 = vmatprep.subr.mxu0 0.0
    %85 = vmatpush1.msra.mxu0 %v62
    %86 = vmatprep.subr.mxu0 0.0
    %87 = vmatpush1.msra.mxu0 %v63
    %88 = vmatprep.subr.mxu0 0.0
    %89 = vmatpush1.msra.mxu0 %v64
    %90 = vmatprep.subr.mxu0 0.0
    %91 = vmatpush1.msra.mxu0 %v65
    %92 = vmatprep.subr.mxu0 0.0
    %93 = vmatpush1.msra.mxu0 %v66
    %94 = vmatprep.subr.mxu0 0.0
    %95 = vmatpush1.msra.mxu0 %v67
    %96 = vmatprep.subr.mxu0 0.0
    %97 = vmatpush1.msra.mxu0 %v68
    %98 = vmatprep.subr.mxu0 0.0
    %99 = vmatpush1.msra.mxu0 %v69
    %100 = vmatprep.subr.mxu0 0.0
    %101 = vmatpush1.msra.mxu0 %v70
    %102 = vmatprep.subr.mxu0 0.0
    %103 = vmatpush1.msra.mxu0 %v71
    %104 = vmatprep.subr.mxu0 0.0
    %105 = vmatpush1.msra.mxu0 0.0
    %106 = vmatprep.subr.mxu0 0.0
    %107 = vmatpush1.msra.mxu0 0.0
    %108 = vmatprep.subr.mxu0 0.0
    %109 = vmatpush1.msra.mxu0 0.0
    %110 = vmatprep.subr.mxu0 0.0
    %111 = vmatpush1.msra.mxu0 0.0
    %112 = vmatprep.subr.mxu0 0.0
    %113 = vmatpush1.msra.mxu0 0.0
    %114 = vmatprep.subr.mxu0 0.0
    %115 = vmatpush1.msra.mxu0 0.0
    %116 = vmatprep.subr.mxu0 0.0
    %117 = vmatpush1.msra.mxu0 0.0
    %118 = vmatprep.subr.mxu0 0.0
    %119 = vmatpush1.msra.mxu0 0.0
    %120 = vmatprep.subr.mxu0 0.0
    %121 = vmatpush1.msra.mxu0 0.0
    %122 = vmatprep.subr.mxu0 0.0
    %123 = vmatpush1.msra.mxu0 0.0
    %124 = vmatprep.subr.mxu0 0.0
    %125 = vmatpush1.msra.mxu0 0.0
    %126 = vmatprep.subr.mxu0 0.0
    %127 = vmatpush1.msra.mxu0 0.0
    %128 = vmatprep.subr.mxu0 0.0
    %129 = vmatpush1.msra.mxu0 0.0
    %130 = vmatprep.subr.mxu0 0.0
    %131 = vmatpush1.msra.mxu0 0.0
    %132 = vmatprep.subr.mxu0 0.0
    %133 = vmatpush1.msra.mxu0 0.0
    %134 = vmatprep.subr.mxu0 0.0
    %135 = vmatpush1.msra.mxu0 0.0
    %136 = vmatprep.mubr.f32.mxu0 0.0
    %137 = vmatmul.mubr.f32.gmra.mrb[0].mxu0 %v54
    %v138 = vpop.f32.mrb[0].mxu0
    %v139 = vadd.f32 0.0, %v138
    %v140 = vpop.f32.mrb[0].mxu0
    %141 = vmatprep.mubr.f32.mxu0 0.0
    %142 = vmatmul.mubr.f32.gmra.mrb[0].mxu0 %v55
    %v143 = vpop.f32.mrb[0].mxu0
    %v144 = vadd.f32 0.0, %v143
    %v145 = vpop.f32.mrb[0].mxu0
    %146 = vdwg.mxu0
    %147 = vst [vmem:[#allocation7] sm:$0xff] %v139
    %148 = vst [vmem:[#allocation7 + $0x8] sm:$0xff] %v144
    %vm149 = vcmp.lt.s32.totalorder %v43, 65
    %v150 = vsel %vm149, %v139, -1e+30
    %v151 = vsel %vm149, %v144, -1e+30
    %152 = vmax.xlane.f32.xlu0 %v150
    %v153 = vpop.xlane.xlu0 %152
    %154 = vmax.xlane.f32.xlu0 %v151
    %v155 = vpop.xlane.xlu0 %154
    %v156 = vsub.f32 %v150, %v153
    %v157 = vsub.f32 %v151, %v155
    %v158 = vmul.f32 %v156, 1.442695
    %v159 = vpow.pop %v158
    %v160 = vmul.f32 %v157, 1.442695
    %v161 = vpow.pop %v160
    %162 = vadd.xlane.f32.xlu0 %v159
    %v163 = vpop.xlane.xlu0 %162
    %164 = vadd.xlane.f32.xlu0 %v161
    %v165 = vpop.xlane.xlu0 %164
    %v166 = vlog2.pop %v163
    %v167 = vmul.f32 %v166, 0.6931472
    %v168 = vlog2.pop %v165
    %v169 = vmul.f32 %v168, 0.6931472
    %v170 = vadd.f32 %v167, %v153
    %v171 = vadd.f32 %v169, %v155
    %172 = vset.pattern.permute.xlu0 0
    %173 = vperm.xlu0 %172, %v40
    %v174 = vpop.permute.xlu0 %173
    %175 = vset.pattern.permute.xlu0 0
    %176 = vperm.xlu0 %175, %v41
    %v177 = vpop.permute.xlu0 %176
    %vm178 = vcmp.eq.s32.totalorder %v43, %v174
    %vm179 = vcmp.eq.s32.totalorder %v43, %v177
    %v180 = vsel %vm178, %v139, 0.0
    %v181 = vsel %vm179, %v144, 0.0
    %182 = vadd.xlane.f32.xlu0 %v180
    %v183 = vpop.xlane.xlu0 %182
    %184 = vadd.xlane.f32.xlu0 %v181
    %v185 = vpop.xlane.xlu0 %184
    %s186 = smul.u32 0, 16
    %v187 = vlaneseq
    %v188 = vshrl.u32 %v187, 7
    %v189 = vadd.s32 %v188, 8
    %v190 = vstv %s186
    %v191 = vadd.s32 %v190, %v188
    %v192 = vadd.s32 %v190, %v189
    %vm193 = vcmp.lt.s32.totalorder %v191, 16
    %vm194 = vcmp.lt.s32.totalorder %v192, 16
    %v195 = vsel %vm193, 1, 0
    %v196 = vsel %vm194, 1, 0
    %v197 = vcvt.s32.f32 %v195
    %v198 = vcvt.s32.f32 %v196
    %s199 = sld [smem:[#allocation2]]
    %v200 = vsub.f32 %v170, %v183
    %v201 = vsub.f32 %v171, %v185
    %v202 = vmul.f32 %v200, %v197
    %v203 = vmul.f32 %v201, %v198
    %vm204 = vcmask 7168
    %v205 = vsel %vm204, %v202, 0.0
    %v206 = vsel %vm204, %v203, 0.0
    %v207 = vadd.f32 %v205, %v206
    %208 = vadd.xlane.f32.xlu0 %v207
    %v209 = vpop.xlane.xlu0 %208
    %v210 = vrot.slane %v209, 4
    %v211 = vadd.f32 %v209, %v210
    %v212 = vrot.slane %v211, 2
    %v213 = vadd.f32 %v211, %v212
    %v214 = vrot.slane %v213, 1
    %v215 = vadd.f32 %v213, %v214
    %s216 = vtos %v215
    %s217 = sadd.f32 %s199, %s216
    %s218 = scalar_lea.smem [#allocation2], 0
    %219 = sst [smem:[%s218]] %s217
    // Predicated region
    $region22: #{tpu_custom_call.1} parent=1 // pred_check
      %p220 = pneg %p32
    $region23: #{tpu_custom_call.1} parent=1 // pred_check_branch
      %222 = sbr.rel (%p220) target = $region25
    $region24: #{tpu_custom_call.1} parent=1 // pred_region
      %s223 = sld [smem:[#allocation2]]
      %v224 = vrcp.pop 16.0
      %s225 = vtos %v224
      %s226 = smul.f32 %s223, %s225
      %s227 = scalar_lea.smem [#allocation8], 0
      %228 = sst [smem:[%s227]] %s226
    $region25: #{tpu_custom_call.1} parent=1 // pred_fallthru
      _
    // Predicated region
    $region26: #{tpu_custom_call.1} parent=1 // pred_check
      _
    $region27: #{tpu_custom_call.1} parent=1 // pred_check_branch
      %230 = sbr.rel (0) target = $region29
    $region28: #{tpu_custom_call.1} parent=1 // pred_region
      %s232 = ssub.s32 256, 256
      %233 = vsyncadd [#allocation5], %s232
      %s234 = sshll.u32 [#allocation7], 4
      %s235 = int_to_ptr.vmem [resolvable:$true] %s234
      %240 = dma.vmem_to_hbm [thread:$0]  %s235, 256, %s3, [#allocation5], 128, 128, 8
    $region29: #{tpu_custom_call.1} parent=1 // pred_fallthru
      _
    // Predicated region
    $region30: #{tpu_custom_call.1} parent=1 // pred_check
      _
    $region31: #{tpu_custom_call.1} parent=1 // pred_check_branch
      %242 = sbr.rel (0) target = $region33
    $region32: #{tpu_custom_call.1} parent=1 // pred_region
      %s244 = ssub.s32 16, 16
      %245 = vsyncadd [#allocation6], %s244
      %248 = dma.smem_to_hbm [#allocation8], 16, %s4, [#allocation6]
    $region33: #{tpu_custom_call.1} parent=1 // pred_fallthru
      _
    // Predicated region
    $region34: #{tpu_custom_call.1} parent=1 // pred_check
      _
    $region35: #{tpu_custom_call.1} parent=1 // pred_check_branch
      %250 = sbr.rel (0) target = $region37
    $region36: #{tpu_custom_call.1} parent=1 // pred_region
      %251 = dma.done [#allocation5], 256
    $region37: #{tpu_custom_call.1} parent=1 // pred_fallthru
      _
    // Predicated region
    $region38: #{tpu_custom_call.1} parent=1 // pred_check
      _
    $region39: #{tpu_custom_call.1} parent=1 // pred_check_branch
      %253 = sbr.rel (0) target = $region41
    $region40: #{tpu_custom_call.1} parent=1 // pred_region
      %254 = dma.done [#allocation6], 16
    $region41: #{tpu_custom_call.1} parent=1 // pred_fallthru
      _
    %255 = sfence
    %256 = vsyncpa [#allocation4], 1
    %257 = vsyncpa [#allocation5], 1
    %258 = vsyncpa [#allocation6], 1

</llo_original>
